<compile_context>
chip_gen: v6e
topology: v6e:2x2x1
jax: 0.10.0
libtpu: 0.0.40
codegen_flags: <defaults>
</compile_context>

<pallas_src>
import functools
import math

import jax
import jax.numpy as jnp
from jax import lax
from jax.experimental import pallas as pl
from jax.experimental.pallas import tpu as pltpu


# ----------------------------------------------------------------------------
# Helpers
# ----------------------------------------------------------------------------
def _vmem_limit_bytes():
    """~75% of per-core VMEM (96 MiB on v5e/v6e, 48 MiB on v7x), capped."""
    try:
        cap = pltpu.get_tpu_info().vmem_capacity_bytes
        return int(min(cap * 3 // 4, 100 * 1024 * 1024))
    except Exception:  # e.g. interpret mode / attribute differences
        return 48 * 1024 * 1024


def _pick_tile(n, target):
    """Largest tile <= target that divides n and is sublane aligned."""
    if n <= target:
        return n
    for t in range(min(target, n), 7, -1):
        if n % t == 0 and t % 8 == 0:
            return t
    # TODO(synk): masked edge tiles for awkward sequence lengths; fall back to
    # keeping the whole axis resident (always correct, costs VMEM for huge n).
    return n


def _row_tile(m_rows, target=256):
    # Padded edge row-blocks are fine for the linear kernels (no row reduction;
    # OOB output rows are clipped on store).
    return m_rows if m_rows <= target else target


# ----------------------------------------------------------------------------
# Kernel 1: per-head projection  y[h] = x @ W[h] + b[h]   (head-major output)
# ----------------------------------------------------------------------------
def _proj_heads_kernel(x_ref, w_ref, b_ref, o_ref, *, compute_dtype):
    x = x_ref[...].astype(compute_dtype)                 # (tm, d_in)
    w = w_ref[...]                                       # (d_in, d_head), already compute_dtype
    acc = jnp.dot(x, w, preferred_element_type=jnp.float32)
    o_ref[...] = (acc + b_ref[...]).astype(o_ref.dtype)  # bias kept f32


def pallas_proj_heads(x2d, w_hd, b_hd, out_dtype, tm=256):
    """x2d: (M, d_in); w_hd: (h, d_in, d_head) compute dtype; b_hd: (h, 1, d_head) f32
       -> (h, M, d_head) out_dtype (head-major, no HBM transpose)."""
    M, d_in = x2d.shape
    h, _, d_head = w_hd.shape
    tm = _row_tile(M, tm)
    grid = (pl.cdiv(M, tm), h)
    kernel = functools.partial(_proj_heads_kernel, compute_dtype=w_hd.dtype)
    # TODO(synk): add a K-reduction grid axis for very large d_in (>~8K) so the
    # whole d_in strip is not kept resident per tile.
    return pl.pallas_call(
        kernel,
        out_shape=jax.ShapeDtypeStruct((h, M, d_head), out_dtype),
        grid=grid,
        in_specs=[
            pl.BlockSpec((tm, d_in), lambda i, j: (i, 0)),
            pl.BlockSpec((None, d_in, d_head), lambda i, j: (j, 0, 0)),
            pl.BlockSpec((None, 1, d_head), lambda i, j: (j, 0, 0)),
        ],
        out_specs=pl.BlockSpec((None, tm, d_head), lambda i, j: (j, i, 0)),
        compiler_params=pltpu.CompilerParams(
            dimension_semantics=("parallel", "parallel"),
            vmem_limit_bytes=_vmem_limit_bytes()),
    )(x2d, w_hd, b_hd)


# ----------------------------------------------------------------------------
# Kernel 2: flash attention with memory slots
#           grid = (batch, head, q-tiles, kv-tiles["arbitrary"])
# ----------------------------------------------------------------------------
def _flash_attn_kernel(q_ref, k_ref, v_ref, mk_ref, mv_ref, o_ref,
                       m_sc, l_sc, acc_sc, *, compute_dtype):
    ki = pl.program_id(3)

    @pl.when(ki == 0)
    def _():
        m_sc[...] = jnp.full_like(m_sc, -jnp.inf)
        l_sc[...] = jnp.zeros_like(l_sc)
        acc_sc[...] = jnp.zeros_like(acc_sc)

    dn = (((1,), (1,)), ((), ()))            # contract last dims (q @ k^T, no .T)
    q = q_ref[...]                           # (tq, d_k), scale folded into W_q
    k = k_ref[...]                           # (tk, d_k)
    v = v_ref[...]                           # (tk, d_v)

    s = lax.dot_general(q, k, dn, preferred_element_type=jnp.float32)  # (tq, tk)
    m_prev = m_sc[...]
    m_new = jnp.maximum(m_prev, jnp.max(s, axis=-1, keepdims=True))
    alpha = jnp.exp(m_prev - m_new)
    p = jnp.exp(s - m_new)
    l_sc[...] = alpha * l_sc[...] + jnp.sum(p, axis=-1, keepdims=True)
    acc_sc[...] = alpha * acc_sc[...] + jnp.dot(
        p.astype(compute_dtype), v, preferred_element_type=jnp.float32)
    m_sc[...] = m_new

    @pl.when(ki == pl.num_programs(3) - 1)
    def _():
        # Fold the tiny memory-slot block in as one extra online-softmax step
        # (once per q-tile, not once per kv step).
        mk = mk_ref[...]                     # (m, d_k), pre-scaled by sqrt(d_k)
        mv = mv_ref[...]                     # (m, d_v), pre-scaled by sqrt(m)
        s2 = lax.dot_general(q, mk, dn, preferred_element_type=jnp.float32)
        m_prev2 = m_sc[...]
        m_new2 = jnp.maximum(m_prev2, jnp.max(s2, axis=-1, keepdims=True))
        alpha2 = jnp.exp(m_prev2 - m_new2)
        p2 = jnp.exp(s2 - m_new2)
        l = alpha2 * l_sc[...] + jnp.sum(p2, axis=-1, keepdims=True)
        acc = alpha2 * acc_sc[...] + jnp.dot(
            p2.astype(compute_dtype), mv, preferred_element_type=jnp.float32)
        o_ref[...] = (acc * pl.reciprocal(l, approx=True)).astype(o_ref.dtype)


def pallas_flash_attention(q, k, v, mk, mv, compute_dtype, tq=256, tk=512):
    """q: (h, b, nq, d_k), k: (h, b, nk, d_k), v: (h, b, nk, d_v),
       mk: (h, m, d_k), mv: (h, m, d_v)  ->  (h, b, nq, d_v) compute_dtype."""
    h, b, nq, d_k = q.shape
    nk = k.shape[2]
    d_v = v.shape[3]
    m = mk.shape[1]
    tq = _pick_tile(nq, tq)
    tk = _pick_tile(nk, tk)
    grid = (b, h, nq // tq, nk // tk)
    kernel = functools.partial(_flash_attn_kernel, compute_dtype=compute_dtype)
    # mk/mv have a constant index_map over batch/kv steps, so they are not
    # re-DMA'd; the extra pipeline buffer they'd save is negligible.
    return pl.pallas_call(
        kernel,
        out_shape=jax.ShapeDtypeStruct((h, b, nq, d_v), compute_dtype),
        grid=grid,
        in_specs=[
            pl.BlockSpec((None, None, tq, d_k), lambda bi, hi, qi, ki: (hi, bi, qi, 0)),
            pl.BlockSpec((None, None, tk, d_k), lambda bi, hi, qi, ki: (hi, bi, ki, 0)),
            pl.BlockSpec((None, None, tk, d_v), lambda bi, hi, qi, ki: (hi, bi, ki, 0)),
            pl.BlockSpec((None, m, d_k), lambda bi, hi, qi, ki: (hi, 0, 0)),
            pl.BlockSpec((None, m, d_v), lambda bi, hi, qi, ki: (hi, 0, 0)),
        ],
        out_specs=pl.BlockSpec((None, None, tq, d_v),
                               lambda bi, hi, qi, ki: (hi, bi, qi, 0)),
        scratch_shapes=[
            pltpu.VMEM((tq, 1), jnp.float32),    # running max
            pltpu.VMEM((tq, 1), jnp.float32),    # running sum
            pltpu.VMEM((tq, d_v), jnp.float32),  # un-normalized accumulator
        ],
        compiler_params=pltpu.CompilerParams(
            dimension_semantics=("parallel", "parallel", "parallel", "arbitrary"),
            vmem_limit_bytes=_vmem_limit_bytes()),
    )(q, k, v, mk, mv)


# ----------------------------------------------------------------------------
# Kernel 3: output projection with head reduction
#           out = sum_h attn[h] @ Wo[h] + bo   (grid head axis = "arbitrary")
# ----------------------------------------------------------------------------
def _out_proj_kernel(a_ref, w_ref, b_ref, o_ref, acc_ref):
    j = pl.program_id(1)

    @pl.when(j == 0)
    def _():
        acc_ref[...] = jnp.zeros_like(acc_ref)

    acc_ref[...] += jnp.dot(a_ref[...], w_ref[...],
                            preferred_element_type=jnp.float32)

    @pl.when(j == pl.num_programs(1) - 1)
    def _():
        o_ref[...] = (acc_ref[...] + b_ref[...]).astype(o_ref.dtype)


def pallas_out_proj(attn_hm, wo_hd, bo, out_dtype=jnp.float32, tm=256):
    """attn_hm: (h, M, d_v); wo_hd: (h, d_v, d_model); bo: (1, d_model)
       -> (M, d_model). Reduces over heads; never materializes (M, h*d_v)."""
    h, M, d_v = attn_hm.shape
    d_model = wo_hd.shape[2]
    tm = _row_tile(M, tm)
    grid = (pl.cdiv(M, tm), h)
    return pl.pallas_call(
        _out_proj_kernel,
        out_shape=jax.ShapeDtypeStruct((M, d_model), out_dtype),
        grid=grid,
        in_specs=[
            pl.BlockSpec((None, tm, d_v), lambda i, j: (j, i, 0)),
            pl.BlockSpec((None, d_v, d_model), lambda i, j: (j, 0, 0)),
            pl.BlockSpec((1, d_model), lambda i, j: (0, 0)),
        ],
        out_specs=pl.BlockSpec((tm, d_model), lambda i, j: (i, 0)),
        scratch_shapes=[pltpu.VMEM((tm, d_model), jnp.float32)],
        compiler_params=pltpu.CompilerParams(
            dimension_semantics=("parallel", "arbitrary"),
            vmem_limit_bytes=_vmem_limit_bytes()),
    )(attn_hm, wo_hd, bo)


# ----------------------------------------------------------------------------
# Parameters
# ----------------------------------------------------------------------------
def xavier_uniform(key, fan_in, fan_out):
    # torch weight is (out, in); we store its transpose (in, out).
    a = math.sqrt(6.0 / (fan_in + fan_out))
    return jax.random.uniform(key, (fan_in, fan_out), jnp.float32, -a, a)


def init_params(key, d_model, d_k, d_v, h, m):
    ks = jax.random.split(key, 6)
    return {
        "wq": xavier_uniform(ks[0], d_model, h * d_k),
        "bq": jnp.zeros((1, h * d_k), jnp.float32),
        "wk": xavier_uniform(ks[1], d_model, h * d_k),
        "bk": jnp.zeros((1, h * d_k), jnp.float32),
        "wv": xavier_uniform(ks[2], d_model, h * d_v),
        "bv": jnp.zeros((1, h * d_v), jnp.float32),
        "wo": xavier_uniform(ks[3], h * d_v, d_model),
        "bo": jnp.zeros((1, d_model), jnp.float32),
        "m_k": jax.random.normal(ks[4], (1, m, h * d_k), jnp.float32) * (1.0 / d_k),
        "m_v": jax.random.normal(ks[5], (1, m, h * d_v), jnp.float32) * (1.0 / m),
    }


def _split_w(w, h, d_head):    # (d_in, h*d_head) -> (h, d_in, d_head)
    d_in = w.shape[0]
    return jnp.transpose(w.reshape(d_in, h, d_head), (1, 0, 2))


def _split_b(b, h, d_head):    # (1, h*d_head) -> (h, 1, d_head)
    return b.reshape(h, 1, d_head)


def _split_mem(p, h, d_head):  # (1, m, h*d_head) -> (h, m, d_head)
    m = p.shape[1]
    return jnp.transpose(p.reshape(m, h, d_head), (1, 0, 2))


def prepare_params(p, d_model, d_k, d_v, h, m, compute_dtype=jnp.bfloat16):
    """One-time conversion: head-major layouts, compute-dtype weights, and
    sqrt scales folded in (1/sqrt(d_k) into W_q/b_q, sqrt(d_k)/sqrt(m) into
    the memory slots) so the kernels never rescale constants per step."""
    qs = 1.0 / math.sqrt(d_k)
    return {
        "wq": _split_w(p["wq"] * qs, h, d_k).astype(compute_dtype),
        "bq": _split_b(p["bq"] * qs, h, d_k),                         # f32 bias
        "wk": _split_w(p["wk"], h, d_k).astype(compute_dtype),
        "bk": _split_b(p["bk"], h, d_k),
        "wv": _split_w(p["wv"], h, d_v).astype(compute_dtype),
        "bv": _split_b(p["bv"], h, d_v),
        "wo": _split_w(p["wo"].reshape(h * d_v, d_model), h, d_model).astype(compute_dtype)
              if False else p["wo"].reshape(h, d_v, d_model).astype(compute_dtype),
        "bo": p["bo"],
        "m_k": (_split_mem(p["m_k"], h, d_k) * math.sqrt(d_k)).astype(compute_dtype),
        "m_v": (_split_mem(p["m_v"], h, d_v) * math.sqrt(m)).astype(compute_dtype),
    }


# ----------------------------------------------------------------------------
# Forward
# ----------------------------------------------------------------------------
def sdpa_memory_forward(prepared, queries, keys, values,
                        compute_dtype=jnp.bfloat16):
    # TODO(synk): attention_mask / attention_weights paths (None in the default
    # forward) are not implemented in the kernel.
    b_s, nq, d_model = queries.shape
    nk = keys.shape[1]
    h, _, d_k = prepared["wq"].shape
    d_v = prepared["wv"].shape[2]

    # Projections write head-major (h, rows, d_head) in compute_dtype
    # (halves intermediate HBM traffic vs f32 interleaved-head slabs).
    q = pallas_proj_heads(queries.reshape(b_s * nq, d_model),
                          prepared["wq"], prepared["bq"], compute_dtype)
    k = pallas_proj_heads(keys.reshape(b_s * nk, d_model),
                          prepared["wk"], prepared["bk"], compute_dtype)
    v = pallas_proj_heads(values.reshape(b_s * nk, d_model),
                          prepared["wv"], prepared["bv"], compute_dtype)

    q = q.reshape(h, b_s, nq, d_k)          # free reshapes (contiguous)
    k = k.reshape(h, b_s, nk, d_k)
    v = v.reshape(h, b_s, nk, d_v)

    attn = pallas_flash_attention(q, k, v, prepared["m_k"], prepared["m_v"],
                                  compute_dtype)              # (h, b, nq, d_v)

    out = pallas_out_proj(attn.reshape(h, b_s * nq, d_v),
                          prepared["wo"], prepared["bo"],
                          out_dtype=jnp.float32)              # (b*nq, d_model)
    return out.reshape(b_s, nq, d_model)


# ----------------------------------------------------------------------------
# Pure-JAX reference (mirrors the PyTorch module)
# ----------------------------------------------------------------------------
def reference_forward(params, queries, keys, values, d_model, d_k, d_v, h, m):
    b_s, nq, _ = queries.shape
    nk = keys.shape[1]
    lin = lambda x, w, b: x @ w + b
    q = lin(queries, params["wq"], params["bq"]).reshape(b_s, nq, h, d_k).transpose(0, 2, 1, 3)
    m_k = math.sqrt(d_k) * jnp.broadcast_to(params["m_k"], (b_s, m, h * d_k))
    m_v = math.sqrt(m) * jnp.broadcast_to(params["m_v"], (b_s, m, h * d_v))
    k = jnp.concatenate([lin(keys, params["wk"], params["bk"]), m_k], axis=1)
    v = jnp.concatenate([lin(values, params["wv"], params["bv"]), m_v], axis=1)
    k = k.reshape(b_s, nk + m, h, d_k).transpose(0, 2, 3, 1)     # (b, h, d_k, nk+m)
    v = v.reshape(b_s, nk + m, h, d_v).transpose(0, 2, 1, 3)
    att = jnp.matmul(q, k) / math.sqrt(d_k)
    att = jax.nn.softmax(att, axis=-1)
    out = jnp.matmul(att, v).transpose(0, 2, 1, 3).reshape(b_s, nq, h * d_v)
    return lin(out, params["wo"], params["bo"])


if __name__ == "__main__":
    d_model, d_k, d_v, h, m = 32, 16, 16, 4, 4
    b_s, nq, nk = 2, 8, 8

    root = jax.random.PRNGKey(0)
    kp, kq, kk, kv = jax.random.split(root, 4)
    params = init_params(kp, d_model, d_k, d_v, h, m)

    queries = jax.random.normal(kq, (b_s, nq, d_model), jnp.float32)
    keys = jax.random.normal(kk, (b_s, nk, d_model), jnp.float32)
    values = jax.random.normal(kv, (b_s, nk, d_model), jnp.float32)

    ref = reference_forward(params, queries, keys, values, d_model, d_k, d_v, h, m)

    # f32-operand path: tight-ish check of the flash algorithm (approx EUP
    # reciprocal + scale folding contribute ~1e-3 deviation at most).
    prep_f32 = prepare_params(params, d_model, d_k, d_v, h, m, jnp.float32)
    out_f32 = sdpa_memory_forward(prep_f32, queries, keys, values, jnp.float32)
    out_f32 = jax.block_until_ready(out_f32)
    assert out_f32.shape == (b_s, nq, d_model)
    assert jnp.allclose(out_f32, ref, atol=1e-2, rtol=1e-2), "f32 path mismatch vs reference"

    # bf16-MXU fast path (f32 accumulation): looser tolerance for bf16
    # rounding of matmul operands and intermediates.
    prep_bf16 = prepare_params(params, d_model, d_k, d_v, h, m, jnp.bfloat16)
    out_bf16 = sdpa_memory_forward(prep_bf16, queries, keys, values, jnp.bfloat16)
    out_bf16 = jax.block_until_ready(out_bf16)
    assert out_bf16.shape == (b_s, nq, d_model)
    assert jnp.allclose(out_bf16, ref, atol=1.5e-1, rtol=5e-2), "bf16 path mismatch vs reference"

    print("KERNEL_OK")
</pallas_src>

<mosaic_0001>
module attributes {stable_mosaic.version = 11 : i64} {
  func.func @_proj_heads_kernel(%arg0: i32, %arg1: i32, %arg2: memref<16x32xf32, #tpu.memory_space<vmem>>, %arg3: memref<1x32x16xf32, #tpu.memory_space<vmem>>, %arg4: memref<1x1x16xf32, #tpu.memory_space<vmem>>, %arg5: memref<1x16x16xf32, #tpu.memory_space<vmem>>) attributes {dimension_semantics = [#tpu.dimension_semantics<parallel>, #tpu.dimension_semantics<parallel>], iteration_bounds = array<i64: 1, 4>, scalar_prefetch = 0 : i64, scratch_operands = 0 : i64, tpu.core_type = #tpu.core_type<tc>, window_params = [{transform_indices = @transform_0, window_bounds = array<i64: 16, 32>}, {transform_indices = @transform_1, window_bounds = array<i64: 1, 32, 16>}, {transform_indices = @transform_2, window_bounds = array<i64: 1, 1, 16>}, {transform_indices = @transform_3, window_bounds = array<i64: 1, 16, 16>}]} {
    %c0 = arith.constant 0 : index
    %c0_0 = arith.constant 0 : index
    %0 = vector.load %arg2[%c0, %c0_0] : memref<16x32xf32, #tpu.memory_space<vmem>>, vector<16x32xf32>
    %c0_1 = arith.constant 0 : index
    %c0_2 = arith.constant 0 : index
    %c0_3 = arith.constant 0 : index
    %1 = vector.load %arg3[%c0_1, %c0_2, %c0_3] : memref<1x32x16xf32, #tpu.memory_space<vmem>>, vector<1x32x16xf32>
    %2 = vector.shape_cast %1 : vector<1x32x16xf32> to vector<32x16xf32>
    %cst = arith.constant dense<0.000000e+00> : vector<16x16xf32>
    %3 = tpu.matmul %0, %2, %cst {dimension_numbers = #tpu.dot_dimension_numbers<[1], [0], [0], [1], [0, 0, 1, 1], [], []>} : vector<16x32xf32>, vector<32x16xf32>, vector<16x16xf32> -> vector<16x16xf32>
    %c0_4 = arith.constant 0 : index
    %c0_5 = arith.constant 0 : index
    %c0_6 = arith.constant 0 : index
    %4 = vector.load %arg4[%c0_4, %c0_5, %c0_6] : memref<1x1x16xf32, #tpu.memory_space<vmem>>, vector<1x1x16xf32>
    %5 = vector.shape_cast %4 : vector<1x1x16xf32> to vector<1x16xf32>
    %6 = vector.broadcast %5 : vector<1x16xf32> to vector<16x16xf32>
    %7 = arith.addf %3, %6 : vector<16x16xf32>
    %c0_7 = arith.constant 0 : index
    %c0_8 = arith.constant 0 : index
    %c0_9 = arith.constant 0 : index
    %8 = vector.load %arg5[%c0_7, %c0_8, %c0_9] : memref<1x16x16xf32, #tpu.memory_space<vmem>>, vector<1x16x16xf32>
    %9 = vector.shape_cast %8 : vector<1x16x16xf32> to vector<16x16xf32>
    %10 = vector.shape_cast %7 : vector<16x16xf32> to vector<1x16x16xf32>
    tpu.vector_store %arg5[%c0_7, %c0_8, %c0_9], %10 {strides = array<i32>} : memref<1x16x16xf32, #tpu.memory_space<vmem>>, vector<1x16x16xf32>,
    return
  }
  func.func @transform_0(%arg0: i32, %arg1: i32) -> (i32, i32) {
    %c0_i32 = arith.constant 0 : i32
    %c0_i32_0 = arith.constant 0 : i32
    return %arg0, %c0_i32 : i32, i32
  }
  func.func @transform_1(%arg0: i32, %arg1: i32) -> (i32, i32, i32) {
    %c0_i32 = arith.constant 0 : i32
    %c0_i32_0 = arith.constant 0 : i32
    %c0_i32_1 = arith.constant 0 : i32
    return %arg1, %c0_i32, %c0_i32_0 : i32, i32, i32
  }
  func.func @transform_2(%arg0: i32, %arg1: i32) -> (i32, i32, i32) {
    %c0_i32 = arith.constant 0 : i32
    %c0_i32_0 = arith.constant 0 : i32
    %c0_i32_1 = arith.constant 0 : i32
    return %arg1, %c0_i32, %c0_i32_0 : i32, i32, i32
  }
  func.func @transform_3(%arg0: i32, %arg1: i32) -> (i32, i32, i32) {
    %c0_i32 = arith.constant 0 : i32
    %c0_i32_0 = arith.constant 0 : i32
    return %arg1, %arg0, %c0_i32 : i32, i32, i32
  }
}

</mosaic_0001>

<llo_original>
// kernel: tpu_custom_call.1
$region0: #{tpu_custom_call.1}
  #allocation0 [shape = 'u32[]', space=smem, size = 0x4, offset = 0x4, fixed_abs, tag = 'smem constant byte address 0x4 - core index']
  #allocation1 [shape = 'u32[144,128]{1,0:T(1,128)}', space=vmem, size = 0x12000, scoped, tag = 'internal scratch']
  %s0 = inlined_call_operand.vmem [shape: f32[16,32], index: 0, kind: input, shape index: {}]
  %s1 = inlined_call_operand.vmem [shape: f32[4,32,16], index: 1, kind: input, shape index: {}]
  %s2 = inlined_call_operand.vmem [shape: f32[4,1,16], index: 2, kind: input, shape index: {}]
  %s3 = inlined_call_operand.hbm [shape: f32[4,16,16], index: 3, kind: output, shape index: {}]
  %s4 = sld [smem:[#allocation0]]
  $region45: #{tpu_custom_call.1} parent=0
    _
  %s6 = ssub.s32 1, %s4
  %s7 = scalar_select 0, %s6, %s4
  $region1: #{tpu_custom_call.1} parent=0
    #allocation2 [shape = 'u8[16384]{0}', space=vmem, size = 0x4000, scoped, tag = 'output window, operand 0']
    #allocation3 [shape = 's32[2]{0}', space=sflag, size = 0x8, scoped, tag = 'scoped memory for tpu_custom_call.1']
    %8 = vsyncpa [#allocation3], 0
    %s9 = scalar_lea.sflag [#allocation3], 1
    %10 = vsyncpa %s9, 0
    loop: start=0, step=1, limit=6
    $region2: #{tpu_custom_call.1} parent=1 // loop_pre_header
      _
    $region3: #{tpu_custom_call.1} parent=1 // loop_header
      %s12 = sphi 0, %s16
      %p13 = scmp.ge.s32.totalorder %s12, 6
      %s19 = sphi 0, %s31
      %s20 = sphi 0, %s27
      %s21 = sphi 0, %s19
      %s22 = sphi 0, %s20
      %s23 = sphi 0, %s21
      %s24 = sphi 0, %s22
      %s34 = sphi 0, %s36
      %s37 = sphi 0, %s34
      %s38 = sphi 0, %s37
      %s54 = sphi 0, %s38
      %s60 = sphi 0, %s62
      %s63 = sphi 0, %s60
      %s64 = sphi 0, %s63
      %s80 = sphi 0, %s64
      %s86 = sphi 0, %s88
      %s89 = sphi 0, %s86
      %s90 = sphi 0, %s89
      %s106 = sphi 0, %s90
      %s114 = sphi 0, %s116
      %s117 = sphi 0, %s114
      %s118 = sphi 0, %s117
      %s134 = sphi 0, %s118
    $region4: #{tpu_custom_call.1} parent=1 // loop_header_branch
      %15 = sbr.rel (%p13) target = $region8
    $region5: #{tpu_custom_call.1} parent=1 // loop_body
      %s17 = ssub.s32 %s12, 1
      %s18 = ssub.s32 %s12, 2
      %s25 = sadd.s32 1, %s20
      %p26 = scmp.ge.s32.totalorder %s25, 4
      %s27 = scalar_select %p26, 0, %s25
      %s28 = sadd.s32 1, %s19
      %s29 = scalar_select %p26, %s28, %s19
      %p30 = scmp.ge.s32.totalorder %s29, 1
      %s31 = scalar_select %p30, 0, %s29
      %s32 = ssub.s32 %s19, %s31
      %p33 = scmp.eq.s32.totalorder %s32, 0
      %s35 = sadd.s32 %s34, 1
      %s36 = scalar_select %p33, %s34, %s35
      %p39 = pneg %p33
      %p40 = scmp.eq.s32.totalorder %s12, 3
      %p41 = por %p39, %p40
      %p42 = scmp.ne.s32.totalorder %s34, %s37
      %p43 = scmp.eq.s32.totalorder %s12, 0
      %p44 = por %p42, %p43
      %p45 = scmp.ne.s32.totalorder %s34, %s37
      %p46 = scmp.eq.s32.totalorder %s17, 3
      %p47 = por %p45, %p46
      %p48 = scmp.ne.s32.totalorder %s37, %s38
      %p49 = scmp.eq.s32.totalorder %s17, 0
      %p50 = por %p48, %p49
      %p51 = scmp.ne.s32.totalorder %s37, %s38
      %p52 = scmp.eq.s32.totalorder %s18, 3
      %p53 = por %p51, %p52
      %p55 = scmp.ne.s32.totalorder %s38, %s54
      %p56 = scmp.eq.s32.totalorder %s18, 0
      %p57 = por %p55, %p56
      %s58 = ssub.s32 %s20, %s27
      %p59 = scmp.eq.s32.totalorder %s58, 0
      %s61 = sadd.s32 %s60, 1
      %s62 = scalar_select %p59, %s60, %s61
      %p65 = pneg %p59
      %p66 = scmp.eq.s32.totalorder %s12, 3
      %p67 = por %p65, %p66
      %p68 = scmp.ne.s32.totalorder %s60, %s63
      %p69 = scmp.eq.s32.totalorder %s12, 0
      %p70 = por %p68, %p69
      %p71 = scmp.ne.s32.totalorder %s60, %s63
      %p72 = scmp.eq.s32.totalorder %s17, 3
      %p73 = por %p71, %p72
      %p74 = scmp.ne.s32.totalorder %s63, %s64
      %p75 = scmp.eq.s32.totalorder %s17, 0
      %p76 = por %p74, %p75
      %p77 = scmp.ne.s32.totalorder %s63, %s64
      %p78 = scmp.eq.s32.totalorder %s18, 3
      %p79 = por %p77, %p78
      %p81 = scmp.ne.s32.totalorder %s64, %s80
      %p82 = scmp.eq.s32.totalorder %s18, 0
      %p83 = por %p81, %p82
      %s84 = ssub.s32 %s20, %s27
      %p85 = scmp.eq.s32.totalorder %s84, 0
      %s87 = sadd.s32 %s86, 1
      %s88 = scalar_select %p85, %s86, %s87
      %p91 = pneg %p85
      %p92 = scmp.eq.s32.totalorder %s12, 3
      %p93 = por %p91, %p92
      %p94 = scmp.ne.s32.totalorder %s86, %s89
      %p95 = scmp.eq.s32.totalorder %s12, 0
      %p96 = por %p94, %p95
      %p97 = scmp.ne.s32.totalorder %s86, %s89
      %p98 = scmp.eq.s32.totalorder %s17, 3
      %p99 = por %p97, %p98
      %p100 = scmp.ne.s32.totalorder %s89, %s90
      %p101 = scmp.eq.s32.totalorder %s17, 0
      %p102 = por %p100, %p101
      %p103 = scmp.ne.s32.totalorder %s89, %s90
      %p104 = scmp.eq.s32.totalorder %s18, 3
      %p105 = por %p103, %p104
      %p107 = scmp.ne.s32.totalorder %s90, %s106
      %p108 = scmp.eq.s32.totalorder %s18, 0
      %p109 = por %p107, %p108
      %s110 = ssub.s32 %s20, %s27
      %s111 = ssub.s32 %s19, %s31
      %s112 = sor.u32 %s110, %s111
      %p113 = scmp.eq.s32.totalorder %s112, 0
      %s115 = sadd.s32 %s114, 1
      %s116 = scalar_select %p113, %s114, %s115
      %p119 = pneg %p113
      %p120 = scmp.eq.s32.totalorder %s12, 3
      %p121 = por %p119, %p120
      %p122 = scmp.ne.s32.totalorder %s114, %s117
      %p123 = scmp.eq.s32.totalorder %s12, 0
      %p124 = por %p122, %p123
      %p125 = scmp.ne.s32.totalorder %s114, %s117
      %p126 = scmp.eq.s32.totalorder %s17, 3
      %p127 = por %p125, %p126
      %p128 = scmp.ne.s32.totalorder %s117, %s118
      %p129 = scmp.eq.s32.totalorder %s17, 0
      %p130 = por %p128, %p129
      %p131 = scmp.ne.s32.totalorder %s117, %s118
      %p132 = scmp.eq.s32.totalorder %s18, 3
      %p133 = por %p131, %p132
      %p135 = scmp.ne.s32.totalorder %s118, %s134
      %p136 = scmp.eq.s32.totalorder %s18, 0
      %p137 = por %p135, %p136
      %p138 = scmp.le.s32.totalorder 1, %s12
      %p139 = scmp.lt.s32.totalorder %s12, 5
      %p140 = pnand %p138, %p139
      %p141 = pneg %p140
      // Predicated region
      $region9: #{tpu_custom_call.1} parent=5 // pred_check
        _
      $region10: #{tpu_custom_call.1} parent=5 // pred_check_branch
        %143 = sbr.rel (%p140) target = $region12
      $region11: #{tpu_custom_call.1} parent=5 // pred_region
        %s144 = ssub.s32 %s12, 1
        // Predicated region
        $region13: #{tpu_custom_call.1} parent=11 // pred_check
          %p145 = pneg %p50
        $region14: #{tpu_custom_call.1} parent=11 // pred_check_branch
          %147 = sbr.rel (%p145) target = $region16
        $region15: #{tpu_custom_call.1} parent=11 // pred_region
          %s148 = smul.u32 2, %s21
          %p149 = scmp.lt.s32.totalorder %s148, 1
          %s150 = scalar_select %p149, %s148, 1
          %s151 = smul.addr %s150, 8
          %s152 = scalar_lea.vmem %s0, %s151
          %s153 = smul.u32 2, %s21
        $region16: #{tpu_custom_call.1} parent=11 // pred_fallthru
          _
      $region12: #{tpu_custom_call.1} parent=5 // pred_fallthru
        _
      %p154 = scmp.lt.s32.totalorder %s12, 4
      // Predicated region
      $region17: #{tpu_custom_call.1} parent=5 // pred_check
        %p155 = pneg %p154
      $region18: #{tpu_custom_call.1} parent=5 // pred_check_branch
        %157 = sbr.rel (%p155) target = $region20
      $region19: #{tpu_custom_call.1} parent=5 // pred_region
        // Predicated region
        $region21: #{tpu_custom_call.1} parent=19 // pred_check
          %p158 = pneg %p70
        $region22: #{tpu_custom_call.1} parent=19 // pred_check_branch
          %160 = sbr.rel (%p158) target = $region24
        $region23: #{tpu_custom_call.1} parent=19 // pred_region
          %p161 = scmp.lt.s32.totalorder %s20, 3
          %s162 = scalar_select %p161, %s20, 3
          %s163 = smul.addr %s162, 4
          %s164 = smul.addr %s163, 8
          %s165 = scalar_lea.vmem %s1, %s164
        $region24: #{tpu_custom_call.1} parent=19 // pred_fallthru
          _
        // Predicated region
        $region25: #{tpu_custom_call.1} parent=19 // pred_check
          %p166 = pneg %p96
        $region26: #{tpu_custom_call.1} parent=19 // pred_check_branch
          %168 = sbr.rel (%p166) target = $region28
        $region27: #{tpu_custom_call.1} parent=19 // pred_region
          %p169 = scmp.lt.s32.totalorder %s20, 3
          %s170 = scalar_select %p169, %s20, 3
          %s171 = scalar_lea.vmem %s2, %s170
        $region28: #{tpu_custom_call.1} parent=19 // pred_fallthru
          _
      $region20: #{tpu_custom_call.1} parent=5 // pred_fallthru
        _
      %p172 = scmp.le.s32.totalorder 1, %s12
      %p173 = scmp.lt.s32.totalorder %s12, 5
      %p174 = pnand %p172, %p173
      %p175 = pneg %p174
      // Predicated region
      $region29: #{tpu_custom_call.1} parent=5 // pred_check
        _
      $region30: #{tpu_custom_call.1} parent=5 // pred_check_branch
        %177 = sbr.rel (%p174) target = $region32
      $region31: #{tpu_custom_call.1} parent=5 // pred_region
        %s178 = ssub.s32 %s12, 1
        %s179 = smul.u32 2, %s21
        %p180 = scmp.lt.s32.totalorder %s179, 1
        %s181 = scalar_select %p180, %s179, 1
        %s182 = smul.addr %s181, 8
        %s183 = scalar_lea.vmem %s0, %s182
        %p184 = pneg %p50
        %p185 = pneg %p47
        %p186 = scmp.lt.s32.totalorder %s22, 3
        %s187 = scalar_select %p186, %s22, 3
        %s188 = smul.addr %s187, 4
        %s189 = smul.addr %s188, 8
        %s190 = scalar_lea.vmem %s1, %s189
        %p191 = pneg %p76
        %p192 = pneg %p73
        %p193 = scmp.lt.s32.totalorder %s22, 3
        %s194 = scalar_select %p193, %s22, 3
        %s195 = scalar_lea.vmem %s2, %s194
        %p196 = pneg %p102
        %p197 = pneg %p99
        %p198 = pneg %p130
        %p199 = pneg %p127
        %s200 = sand.u32 %s117, 1
        %s201 = scalar_lea.sflag [#allocation3], %s200
        %s202 = sand.u32 %s117, 1
        %s203 = smul.addr %s202, 16
        %s204 = scalar_lea.vmem [#allocation2], %s203
        %s205 = smul.u32 2, %s21
        %p206 = scmp.lt.s32.totalorder %s205, 1
        %s207 = scalar_select %p206, %s205, 1
        %s208 = smul.addr %s207, 8
        %s209 = scalar_lea.vmem %s0, %s208
        %s210 = smul.u32 2, %s21
        %p211 = scmp.lt.s32.totalorder %s22, 3
        %s212 = scalar_select %p211, %s22, 3
        %s213 = smul.addr %s212, 4
        %s214 = smul.addr %s213, 8
        %s215 = scalar_lea.vmem %s1, %s214
        %p216 = scmp.lt.s32.totalorder %s22, 3
        %s217 = scalar_select %p216, %s22, 3
        %s218 = scalar_lea.vmem %s2, %s217
        %s219 = smul.u32 2, %s21
        %v220 = vld [vmem:[%s209] sm:$0xff]
        %v221 = vld [vmem:[%s209 + $0x8] sm:$0xff]
        %v222 = vld [vmem:[%s215] sm:$0xff]
        %v223 = vld [vmem:[%s215 + $0x8] sm:$0xff]
        %v224 = vld [vmem:[%s215 + $0x10] sm:$0xff]
        %v225 = vld [vmem:[%s215 + $0x18] sm:$0xff]
        %v226 = vld [vmem:[%s218] sm:$0x1]
        %v228 = vlaneseq
        %v229 = vshrl.u32 %v228, 7
        %v230 = vsub.s32 0, %v229
        %v231 = vrot.slane %v226, %v230
        %vm233 = vcmask 261120
        %v235 = vsel %vm233, %v220, 0
        %v238 = vsel %vm233, %v221, 0
        %240 = vmatprep.subr.mxu0 0.0
        %241 = vmatpush1.msra.mxu0 0.0
        %242 = vmatprep.subr.mxu0 0.0
        %243 = vmatpush1.msra.mxu0 0.0
        %244 = vmatprep.subr.mxu0 0.0
        %245 = vmatpush1.msra.mxu0 0.0
        %246 = vmatprep.subr.mxu0 0.0
        %247 = vmatpush1.msra.mxu0 0.0
        %248 = vmatprep.subr.mxu0 0.0
        %249 = vmatpush1.msra.mxu0 0.0
        %250 = vmatprep.subr.mxu0 0.0
        %251 = vmatpush1.msra.mxu0 0.0
        %252 = vmatprep.subr.mxu0 0.0
        %253 = vmatpush1.msra.mxu0 0.0
        %254 = vmatprep.subr.mxu0 0.0
        %255 = vmatpush1.msra.mxu0 0.0
        %256 = vmatprep.subr.mxu0 0.0
        %257 = vmatpush1.msra.mxu0 0.0
        %258 = vmatprep.subr.mxu0 0.0
        %259 = vmatpush1.msra.mxu0 0.0
        %260 = vmatprep.subr.mxu0 0.0
        %261 = vmatpush1.msra.mxu0 0.0
        %262 = vmatprep.subr.mxu0 0.0
        %263 = vmatpush1.msra.mxu0 0.0
        %264 = vmatprep.subr.mxu0 0.0
        %265 = vmatpush1.msra.mxu0 %v225
        %266 = vmatprep.subr.mxu0 0.0
        %267 = vmatpush1.msra.mxu0 %v224
        %268 = vmatprep.subr.mxu0 0.0
        %269 = vmatpush1.msra.mxu0 %v223
        %270 = vmatprep.subr.mxu0 0.0
        %271 = vmatpush1.msra.mxu0 %v222
        %272 = vmatprep.subr.mxu0 0.0
        %273 = vmatpush2.msra.mxu0 0.0
        %274 = vmatprep.subr.mxu0 0.0
        %275 = vmatpush2.msra.mxu0 0.0
        %276 = vmatprep.subr.mxu0 0.0
        %277 = vmatpush2.msra.mxu0 0.0
        %278 = vmatprep.subr.mxu0 0.0
        %279 = vmatpush2.msra.mxu0 0.0
        %280 = vmatprep.subr.mxu0 0.0
        %281 = vmatpush2.msra.mxu0 0.0
        %282 = vmatprep.subr.mxu0 0.0
        %283 = vmatpush2.msra.mxu0 0.0
        %284 = vmatprep.subr.mxu0 0.0
        %285 = vmatpush2.msra.mxu0 0.0
        %286 = vmatprep.subr.mxu0 0.0
        %287 = vmatpush2.msra.mxu0 0.0
        %288 = vmatprep.subr.mxu0 0.0
        %289 = vmatpush2.msra.mxu0 0.0
        %290 = vmatprep.subr.mxu0 0.0
        %291 = vmatpush2.msra.mxu0 0.0
        %292 = vmatprep.subr.mxu0 0.0
        %293 = vmatpush2.msra.mxu0 0.0
        %294 = vmatprep.subr.mxu0 0.0
        %295 = vmatpush2.msra.mxu0 0.0
        %296 = vmatprep.subr.mxu0 0.0
        %297 = vmatpush2.msra.mxu0 0.0
        %298 = vmatprep.subr.mxu0 0.0
        %299 = vmatpush2.msra.mxu0 0.0
        %300 = vmatprep.subr.mxu0 0.0
        %301 = vmatpush2.msra.mxu0 0.0
        %302 = vmatprep.subr.mxu0 0.0
        %303 = vmatpush2.msra.mxu0 0.0
        %304 = vmatprep.mubr.f32.mxu0 0.0
        %305 = vmatmul.mubr.f32.gmra.mxu0 %v235
        %v306 = vpop.f32.mrf.mxu0
        %v307 = vadd.f32 %v231, %v306
        %v308 = vpop.f32.mrf.mxu0
        %309 = vmatprep.mubr.f32.mxu0 0.0
        %310 = vmatmul.mubr.f32.gmra.mxu0 %v238
        %v311 = vpop.f32.mrf.mxu0
        %v312 = vadd.f32 %v231, %v311
        %v313 = vpop.f32.mrf.mxu0
        %314 = vdwg.mxu0
        %vm315 = vcmask 130048
        %316 = vst.msk [vmem:[%s204] sm:$0xff] %vm315, %v307
        %317 = vst.msk [vmem:[%s204 + $0x8] sm:$0xff] %vm315, %v312
        %s318 = sand.u32 %s117, 1
        %s319 = scalar_lea.sflag [#allocation3], %s318
        %s320 = sand.u32 %s117, 1
        %s321 = smul.addr %s320, 16
        %s322 = scalar_lea.vmem [#allocation2], %s321
        // Predicated region
        $region33: #{tpu_custom_call.1} parent=31 // pred_check
          %p323 = pneg %p127
        $region34: #{tpu_custom_call.1} parent=31 // pred_check_branch
          %325 = sbr.rel (%p323) target = $region36
        $region35: #{tpu_custom_call.1} parent=31 // pred_region
          %s326 = smul.u32 2, %s21
          %s328 = ssub.s32 256, 256
          %329 = vsyncadd %s319, %s328
          %s330 = smul.addr %s22, 2
          %s331 = sadd.s32 %s326, %s330
          %s332 = smul.addr %s331, 128
          %s333 = scalar_lea.hbm %s3, %s332
          %s334 = sshll.u32 %s322, 4
          %s335 = int_to_ptr.vmem [resolvable:$true] %s334
          %340 = dma.vmem_to_hbm [thread:$0]  %s335, 256, %s333, %s319, 128, 128, 8
        $region36: #{tpu_custom_call.1} parent=31 // pred_fallthru
          _
      $region32: #{tpu_custom_call.1} parent=5 // pred_fallthru
        _
      %p341 = scmp.le.s32.totalorder 2, %s12
      // Predicated region
      $region37: #{tpu_custom_call.1} parent=5 // pred_check
        %p342 = pneg %p341
      $region38: #{tpu_custom_call.1} parent=5 // pred_check_branch
        %344 = sbr.rel (%p342) target = $region40
      $region39: #{tpu_custom_call.1} parent=5 // pred_region
        %s345 = ssub.s32 %s12, 2
        // Predicated region
        $region41: #{tpu_custom_call.1} parent=39 // pred_check
          %p346 = pneg %p133
        $region42: #{tpu_custom_call.1} parent=39 // pred_check_branch
          %348 = sbr.rel (%p346) target = $region44
        $region43: #{tpu_custom_call.1} parent=39 // pred_region
          %s349 = sand.u32 %s118, 1
          %s350 = scalar_lea.sflag [#allocation3], %s349
          %s351 = sand.u32 %s118, 1
          %s352 = smul.addr %s351, 16
          %s353 = scalar_lea.vmem [#allocation2], %s352
          %354 = dma.done %s350, 256
        $region44: #{tpu_custom_call.1} parent=39 // pred_fallthru
          _
      $region40: #{tpu_custom_call.1} parent=5 // pred_fallthru
        _
    $region6: #{tpu_custom_call.1} parent=1 // loop_footer
      %s16 = sadd.s32 1, %s12
    $region7: #{tpu_custom_call.1} parent=1 // loop_footer_branch
      %11 = sbr.rel target = $region3
    $region8: #{tpu_custom_call.1} parent=1 // loop_exit
      _
    %355 = vsyncpa [#allocation3], 1
    %s356 = scalar_lea.sflag [#allocation3], 1
    %357 = vsyncpa %s356, 1

</llo_original>
